<compile_context>
chip_gen: v7x
topology: tpu7x:2x2x1
jax: 0.10.0
libtpu: 0.0.40
codegen_flags: <defaults>
</compile_context>

<pallas_src>
import functools

import jax
import jax.numpy as jnp
import numpy as np
from jax.experimental import pallas as pl
from jax.experimental.pallas import tpu as pltpu


def _kcrps_kernel(tgt_ref, pred_ref, out_ref, *, ens: int, denom: int,
                  bf16_compute: bool):
    # tgt_ref : (1, 1, R, 128)
    # pred_ref: (1, E, R, 128)
    # out_ref : (1, R, 128)
    cdt = jnp.bfloat16 if bf16_compute else jnp.float32

    def load_pred(i):
        r = pred_ref[0, i]
        return r if r.dtype == cdt else r.astype(cdt)

    t = tgt_ref[0, 0]
    t = t if t.dtype == cdt else t.astype(cdt)

    shape = (tgt_ref.shape[2], tgt_ref.shape[3])

    # Skill accumulator (E|X - y|) in f32; sub/abs done in the compute dtype
    # (bf16 on v6e/v7x when the inputs are bf16, else f32).
    skill = jnp.zeros(shape, jnp.float32)

    # Multiple independent accumulators for the O(E^2) pairwise spread sum
    # to break the serial add-dependence chain (restores VALU ILP).
    n_pairs = ens * (ens - 1) // 2
    n_acc = max(1, min(4, n_pairs))
    spread_accs = [jnp.zeros(shape, jnp.float32) for _ in range(n_acc)]

    pair = 0
    for i in range(ens):
        pi = load_pred(i)
        skill = skill + jnp.abs(pi - t).astype(jnp.float32)
        for j in range(i + 1, ens):
            pj = load_pred(j)
            spread_accs[pair % n_acc] = (
                spread_accs[pair % n_acc] + jnp.abs(pi - pj).astype(jnp.float32)
            )
            pair += 1

    spread = spread_accs[0]
    for a in spread_accs[1:]:
        spread = spread + a

    result = skill / float(ens) - spread / float(denom)
    out_ref[0] = result.astype(out_ref.dtype)


def _pick_tile_rows(total_rows: int, max_rows: int) -> int:
    # Largest divisor of total_rows that is a multiple of 8 (sublane-dense)
    # and <= max_rows; fall back to the full extent (always a legal block).
    for r in range(min(max_rows, total_rows), 0, -1):
        if total_rows % r == 0 and (r % 8 == 0 or r == total_rows):
            return r
    return total_rows


def kcrps_loss(target, pred, *, biased: bool = False, max_tile_rows: int = 64):
    """target: (B, C, H, W); pred: (B*E, C, H, W). Returns (B, C, H, W)."""
    B = target.shape[0]
    assert pred.shape[0] % B == 0, "pred leading dim must be a multiple of batch"
    # mirrors the PyTorch ensemble-size computation
    ens = pred.shape[0] // B + pred.shape[0] % B
    spatial = target.shape[1:]
    N = int(np.prod(spatial))
    assert N % 128 == 0, "flattened C*H*W must be a multiple of 128"

    rows = N // 128
    tile_rows = _pick_tile_rows(rows, max_tile_rows)

    pred4 = pred.reshape(B, ens, rows, 128)
    tgt4 = target.reshape(B, 1, rows, 128)

    denom = ens * ens if biased else ens * (ens - 1)
    bf16_compute = (pred.dtype == jnp.bfloat16 and target.dtype == jnp.bfloat16)

    kernel = functools.partial(
        _kcrps_kernel, ens=ens, denom=denom, bf16_compute=bf16_compute)

    n_pairs = ens * (ens - 1) // 2
    itemsize = np.dtype(target.dtype).itemsize
    cost = pl.CostEstimate(
        flops=int(B * N * (3 * ens + 3 * n_pairs)),
        transcendentals=0,
        bytes_accessed=int((ens + 2) * B * N * itemsize),
    )

    out3 = pl.pallas_call(
        kernel,
        out_shape=jax.ShapeDtypeStruct((B, rows, 128), target.dtype),
        grid_spec=pltpu.PrefetchScalarGridSpec(
            num_scalar_prefetch=0,
            grid=(B, rows // tile_rows),
            in_specs=[
                # target: (1, 1, R, 128) block
                pl.BlockSpec((1, 1, tile_rows, 128), lambda b, n: (b, 0, n, 0)),
                # pred:   (1, E, R, 128) block (whole ensemble in one tile)
                pl.BlockSpec((1, ens, tile_rows, 128), lambda b, n: (b, 0, n, 0)),
            ],
            # dense (R, 128) output slab -> unmasked stores
            out_specs=pl.BlockSpec((1, tile_rows, 128), lambda b, n: (b, n, 0)),
        ),
        compiler_params=pltpu.CompilerParams(
            dimension_semantics=("parallel", "parallel")),
        cost_estimate=cost,
    )(tgt4, pred4)

    return out3.reshape(target.shape)


def _kcrps_ref(target, pred, *, biased: bool = False):
    """Plain-JAX reference mirroring the PyTorch implementation (sorted form)."""
    B = target.shape[0]
    ens = pred.shape[0] // B + pred.shape[0] % B
    pred = pred.reshape(B, ens, *target.shape[1:])          # (B, E, C, H, W)
    pred = jnp.moveaxis(pred, 1, -1)                        # (B, C, H, W, E)
    skill = jnp.mean(jnp.abs(pred - target[..., None]), axis=-1)
    pred_sorted = jnp.sort(pred, axis=-1)
    m = ens
    i = jnp.arange(1, m + 1, dtype=pred.dtype)
    denom = m * m if biased else m * (m - 1)
    factor = (2 * i - m - 1) / denom
    spread = jnp.sum(factor * pred_sorted, axis=-1)
    return skill - spread


if __name__ == "__main__":
    key = jax.random.PRNGKey(0)
    k1, k2 = jax.random.split(key)

    B, E, C, H, W = 2, 4, 4, 16, 16
    target = jax.random.normal(k1, (B, C, H, W), dtype=jnp.float32)
    pred = jax.random.normal(k2, (B * E, C, H, W), dtype=jnp.float32)

    out = kcrps_loss(target, pred, biased=False)
    out = jax.block_until_ready(out)

    ref = _kcrps_ref(target, pred, biased=False)
    assert out.shape == target.shape
    np.testing.assert_allclose(np.asarray(out), np.asarray(ref), rtol=1e-5, atol=1e-5)

    print("KERNEL_OK")
</pallas_src>

<mosaic_0001>
module attributes {stable_mosaic.version = 11 : i64} {
  func.func @_kcrps_kernel(%arg0: i32, %arg1: i32, %arg2: memref<1x1x8x128xf32, #tpu.memory_space<vmem>>, %arg3: memref<1x4x8x128xf32, #tpu.memory_space<vmem>>, %arg4: memref<1x8x128xf32, #tpu.memory_space<vmem>>) attributes {dimension_semantics = [#tpu.dimension_semantics<parallel>, #tpu.dimension_semantics<parallel>], iteration_bounds = array<i64: 2, 1>, scalar_prefetch = 0 : i64, scratch_operands = 0 : i64, tpu.core_type = #tpu.core_type<tc>, window_params = [{transform_indices = @transform_0, window_bounds = array<i64: 1, 1, 8, 128>}, {transform_indices = @transform_1, window_bounds = array<i64: 1, 4, 8, 128>}, {transform_indices = @transform_2, window_bounds = array<i64: 1, 8, 128>}]} {
    %c0 = arith.constant 0 : index
    %c0_0 = arith.constant 0 : index
    %c0_1 = arith.constant 0 : index
    %c0_2 = arith.constant 0 : index
    %0 = vector.load %arg2[%c0, %c0_0, %c0_1, %c0_2] : memref<1x1x8x128xf32, #tpu.memory_space<vmem>>, vector<1x1x8x128xf32>
    %1 = vector.shape_cast %0 : vector<1x1x8x128xf32> to vector<8x128xf32>
    %cst = arith.constant 0.000000e+00 : f32
    %2 = vector.broadcast %cst : f32 to vector<8x128xf32>
    %cst_3 = arith.constant 0.000000e+00 : f32
    %3 = vector.broadcast %cst_3 : f32 to vector<8x128xf32>
    %cst_4 = arith.constant 0.000000e+00 : f32
    %4 = vector.broadcast %cst_4 : f32 to vector<8x128xf32>
    %cst_5 = arith.constant 0.000000e+00 : f32
    %5 = vector.broadcast %cst_5 : f32 to vector<8x128xf32>
    %cst_6 = arith.constant 0.000000e+00 : f32
    %6 = vector.broadcast %cst_6 : f32 to vector<8x128xf32>
    %c0_7 = arith.constant 0 : index
    %c0_8 = arith.constant 0 : index
    %c0_9 = arith.constant 0 : index
    %c0_10 = arith.constant 0 : index
    %7 = vector.load %arg3[%c0_7, %c0_8, %c0_9, %c0_10] : memref<1x4x8x128xf32, #tpu.memory_space<vmem>>, vector<1x1x8x128xf32>
    %8 = vector.shape_cast %7 : vector<1x1x8x128xf32> to vector<8x128xf32>
    %9 = arith.subf %8, %1 : vector<8x128xf32>
    %10 = math.absf %9 : vector<8x128xf32>
    %11 = arith.addf %2, %10 : vector<8x128xf32>
    %c0_11 = arith.constant 0 : index
    %c1 = arith.constant 1 : index
    %c0_12 = arith.constant 0 : index
    %c0_13 = arith.constant 0 : index
    %12 = vector.load %arg3[%c0_11, %c1, %c0_12, %c0_13] : memref<1x4x8x128xf32, #tpu.memory_space<vmem>>, vector<1x1x8x128xf32>
    %13 = vector.shape_cast %12 : vector<1x1x8x128xf32> to vector<8x128xf32>
    %14 = arith.subf %8, %13 : vector<8x128xf32>
    %15 = math.absf %14 : vector<8x128xf32>
    %16 = arith.addf %3, %15 : vector<8x128xf32>
    %c0_14 = arith.constant 0 : index
    %c2 = arith.constant 2 : index
    %c0_15 = arith.constant 0 : index
    %c0_16 = arith.constant 0 : index
    %17 = vector.load %arg3[%c0_14, %c2, %c0_15, %c0_16] : memref<1x4x8x128xf32, #tpu.memory_space<vmem>>, vector<1x1x8x128xf32>
    %18 = vector.shape_cast %17 : vector<1x1x8x128xf32> to vector<8x128xf32>
    %19 = arith.subf %8, %18 : vector<8x128xf32>
    %20 = math.absf %19 : vector<8x128xf32>
    %21 = arith.addf %4, %20 : vector<8x128xf32>
    %c0_17 = arith.constant 0 : index
    %c3 = arith.constant 3 : index
    %c0_18 = arith.constant 0 : index
    %c0_19 = arith.constant 0 : index
    %22 = vector.load %arg3[%c0_17, %c3, %c0_18, %c0_19] : memref<1x4x8x128xf32, #tpu.memory_space<vmem>>, vector<1x1x8x128xf32>
    %23 = vector.shape_cast %22 : vector<1x1x8x128xf32> to vector<8x128xf32>
    %24 = arith.subf %8, %23 : vector<8x128xf32>
    %25 = math.absf %24 : vector<8x128xf32>
    %26 = arith.addf %5, %25 : vector<8x128xf32>
    %c0_20 = arith.constant 0 : index
    %c1_21 = arith.constant 1 : index
    %c0_22 = arith.constant 0 : index
    %c0_23 = arith.constant 0 : index
    %27 = vector.load %arg3[%c0_20, %c1_21, %c0_22, %c0_23] : memref<1x4x8x128xf32, #tpu.memory_space<vmem>>, vector<1x1x8x128xf32>
    %28 = vector.shape_cast %27 : vector<1x1x8x128xf32> to vector<8x128xf32>
    %29 = arith.subf %28, %1 : vector<8x128xf32>
    %30 = math.absf %29 : vector<8x128xf32>
    %31 = arith.addf %11, %30 : vector<8x128xf32>
    %c0_24 = arith.constant 0 : index
    %c2_25 = arith.constant 2 : index
    %c0_26 = arith.constant 0 : index
    %c0_27 = arith.constant 0 : index
    %32 = vector.load %arg3[%c0_24, %c2_25, %c0_26, %c0_27] : memref<1x4x8x128xf32, #tpu.memory_space<vmem>>, vector<1x1x8x128xf32>
    %33 = vector.shape_cast %32 : vector<1x1x8x128xf32> to vector<8x128xf32>
    %34 = arith.subf %28, %33 : vector<8x128xf32>
    %35 = math.absf %34 : vector<8x128xf32>
    %36 = arith.addf %6, %35 : vector<8x128xf32>
    %c0_28 = arith.constant 0 : index
    %c3_29 = arith.constant 3 : index
    %c0_30 = arith.constant 0 : index
    %c0_31 = arith.constant 0 : index
    %37 = vector.load %arg3[%c0_28, %c3_29, %c0_30, %c0_31] : memref<1x4x8x128xf32, #tpu.memory_space<vmem>>, vector<1x1x8x128xf32>
    %38 = vector.shape_cast %37 : vector<1x1x8x128xf32> to vector<8x128xf32>
    %39 = arith.subf %28, %38 : vector<8x128xf32>
    %40 = math.absf %39 : vector<8x128xf32>
    %41 = arith.addf %16, %40 : vector<8x128xf32>
    %c0_32 = arith.constant 0 : index
    %c2_33 = arith.constant 2 : index
    %c0_34 = arith.constant 0 : index
    %c0_35 = arith.constant 0 : index
    %42 = vector.load %arg3[%c0_32, %c2_33, %c0_34, %c0_35] : memref<1x4x8x128xf32, #tpu.memory_space<vmem>>, vector<1x1x8x128xf32>
    %43 = vector.shape_cast %42 : vector<1x1x8x128xf32> to vector<8x128xf32>
    %44 = arith.subf %43, %1 : vector<8x128xf32>
    %45 = math.absf %44 : vector<8x128xf32>
    %46 = arith.addf %31, %45 : vector<8x128xf32>
    %c0_36 = arith.constant 0 : index
    %c3_37 = arith.constant 3 : index
    %c0_38 = arith.constant 0 : index
    %c0_39 = arith.constant 0 : index
    %47 = vector.load %arg3[%c0_36, %c3_37, %c0_38, %c0_39] : memref<1x4x8x128xf32, #tpu.memory_space<vmem>>, vector<1x1x8x128xf32>
    %48 = vector.shape_cast %47 : vector<1x1x8x128xf32> to vector<8x128xf32>
    %49 = arith.subf %43, %48 : vector<8x128xf32>
    %50 = math.absf %49 : vector<8x128xf32>
    %51 = arith.addf %21, %50 : vector<8x128xf32>
    %c0_40 = arith.constant 0 : index
    %c3_41 = arith.constant 3 : index
    %c0_42 = arith.constant 0 : index
    %c0_43 = arith.constant 0 : index
    %52 = vector.load %arg3[%c0_40, %c3_41, %c0_42, %c0_43] : memref<1x4x8x128xf32, #tpu.memory_space<vmem>>, vector<1x1x8x128xf32>
    %53 = vector.shape_cast %52 : vector<1x1x8x128xf32> to vector<8x128xf32>
    %54 = arith.subf %53, %1 : vector<8x128xf32>
    %55 = math.absf %54 : vector<8x128xf32>
    %56 = arith.addf %46, %55 : vector<8x128xf32>
    %57 = arith.addf %41, %51 : vector<8x128xf32>
    %58 = arith.addf %57, %26 : vector<8x128xf32>
    %59 = arith.addf %58, %36 : vector<8x128xf32>
    %cst_44 = arith.constant 4.000000e+00 : f32
    %60 = vector.broadcast %cst_44 : f32 to vector<8x128xf32>
    %61 = arith.divf %56, %60 : vector<8x128xf32>
    %cst_45 = arith.constant 1.200000e+01 : f32
    %62 = vector.broadcast %cst_45 : f32 to vector<8x128xf32>
    %63 = arith.divf %59, %62 : vector<8x128xf32>
    %64 = arith.subf %61, %63 : vector<8x128xf32>
    %c0_46 = arith.constant 0 : index
    %c0_47 = arith.constant 0 : index
    %c0_48 = arith.constant 0 : index
    %65 = vector.load %arg4[%c0_46, %c0_47, %c0_48] : memref<1x8x128xf32, #tpu.memory_space<vmem>>, vector<1x8x128xf32>
    %66 = vector.shape_cast %65 : vector<1x8x128xf32> to vector<8x128xf32>
    %67 = vector.shape_cast %64 : vector<8x128xf32> to vector<1x8x128xf32>
    tpu.vector_store %arg4[%c0_46, %c0_47, %c0_48], %67 {strides = array<i32>} : memref<1x8x128xf32, #tpu.memory_space<vmem>>, vector<1x8x128xf32>,
    return
  }
  func.func @transform_0(%arg0: i32, %arg1: i32) -> (i32, i32, i32, i32) {
    %c0_i32 = arith.constant 0 : i32
    %c0_i32_0 = arith.constant 0 : i32
    %c0_i32_1 = arith.constant 0 : i32
    return %arg0, %c0_i32, %arg1, %c0_i32_0 : i32, i32, i32, i32
  }
  func.func @transform_1(%arg0: i32, %arg1: i32) -> (i32, i32, i32, i32) {
    %c0_i32 = arith.constant 0 : i32
    %c0_i32_0 = arith.constant 0 : i32
    %c0_i32_1 = arith.constant 0 : i32
    return %arg0, %c0_i32, %arg1, %c0_i32_0 : i32, i32, i32, i32
  }
  func.func @transform_2(%arg0: i32, %arg1: i32) -> (i32, i32, i32) {
    %c0_i32 = arith.constant 0 : i32
    %c0_i32_0 = arith.constant 0 : i32
    return %arg0, %arg1, %c0_i32 : i32, i32, i32
  }
}

</mosaic_0001>

<llo_original>
// kernel: tpu_custom_call.1
$region0: #{tpu_custom_call.1}
  #allocation0 [shape = 'u32[]', space=smem, size = 0x4, offset = 0x4, fixed_abs, tag = 'smem constant byte address 0x4 - core index']
  #allocation1 [shape = 'u32[144,128]{1,0:T(1,128)}', space=vmem, size = 0x12000, scoped, tag = 'internal scratch']
  %s0 = inlined_call_operand.hbm [shape: f32[2,1,8,128], index: 0, kind: input, shape index: {}]
  %s1 = inlined_call_operand.hbm [shape: f32[2,4,8,128], index: 1, kind: input, shape index: {}]
  %s2 = inlined_call_operand.hbm [shape: f32[2,8,128], index: 2, kind: output, shape index: {}]
  %s3 = sld [smem:[#allocation0]]
  $region49: #{tpu_custom_call.1} parent=0
    _
  %s5 = ssub.s32 1, %s3
  %s6 = scalar_select 0, %s5, %s3
  $region1: #{tpu_custom_call.1} parent=0
    #allocation2 [shape = 'u8[8192]{0}', space=vmem, size = 0x2000, scoped, tag = 'input window, operand 0']
    #allocation3 [shape = 's32[2]{0}', space=sflag, size = 0x8, scoped, tag = 'scoped memory for tpu_custom_call.1']
    #allocation4 [shape = 's32[2]{0}', space=sflag, size = 0x8, scoped, tag = 'scoped memory for tpu_custom_call.1']
    #allocation5 [shape = 'u8[32768]{0}', space=vmem, size = 0x8000, scoped, tag = 'input window, operand 1']
    #allocation6 [shape = 's32[2]{0}', space=sflag, size = 0x8, scoped, tag = 'scoped memory for tpu_custom_call.1']
    #allocation7 [shape = 'u8[8192]{0}', space=vmem, size = 0x2000, scoped, tag = 'output window, operand 0']
    %7 = vsyncpa [#allocation3], 0
    %s8 = scalar_lea.sflag [#allocation3], 1
    %9 = vsyncpa %s8, 0
    %10 = vsyncpa [#allocation6], 0
    %s11 = scalar_lea.sflag [#allocation6], 1
    %12 = vsyncpa %s11, 0
    %13 = vsyncpa [#allocation4], 0
    %s14 = scalar_lea.sflag [#allocation4], 1
    %15 = vsyncpa %s14, 0
    loop: start=0, step=1, limit=4
    $region2: #{tpu_custom_call.1} parent=1 // loop_pre_header
      _
    $region3: #{tpu_custom_call.1} parent=1 // loop_header
      %s17 = sphi 0, %s21
      %p18 = scmp.ge.s32.totalorder %s17, 4
      %s24 = sphi 0, %s36
      %s25 = sphi 0, %s32
      %s26 = sphi 0, %s24
      %s27 = sphi 0, %s25
      %s28 = sphi 0, %s26
      %s29 = sphi 0, %s27
      %s41 = sphi 0, %s43
      %s44 = sphi 0, %s41
      %s45 = sphi 0, %s44
      %s61 = sphi 0, %s45
      %s69 = sphi 0, %s71
      %s72 = sphi 0, %s69
      %s73 = sphi 0, %s72
      %s89 = sphi 0, %s73
      %s97 = sphi 0, %s99
      %s100 = sphi 0, %s97
      %s101 = sphi 0, %s100
      %s117 = sphi 0, %s101
    $region4: #{tpu_custom_call.1} parent=1 // loop_header_branch
      %20 = sbr.rel (%p18) target = $region8
    $region5: #{tpu_custom_call.1} parent=1 // loop_body
      %s22 = ssub.s32 %s17, 1
      %s23 = ssub.s32 %s17, 2
      %s30 = sadd.s32 1, %s25
      %p31 = scmp.ge.s32.totalorder %s30, 1
      %s32 = scalar_select %p31, 0, %s30
      %s33 = sadd.s32 1, %s24
      %s34 = scalar_select %p31, %s33, %s24
      %p35 = scmp.ge.s32.totalorder %s34, 2
      %s36 = scalar_select %p35, 0, %s34
      %s37 = ssub.s32 %s24, %s36
      %s38 = ssub.s32 %s25, %s32
      %s39 = sor.u32 %s37, %s38
      %p40 = scmp.eq.s32.totalorder %s39, 0
      %s42 = sadd.s32 %s41, 1
      %s43 = scalar_select %p40, %s41, %s42
      %p46 = pneg %p40
      %p47 = scmp.eq.s32.totalorder %s17, 1
      %p48 = por %p46, %p47
      %p49 = scmp.ne.s32.totalorder %s41, %s44
      %p50 = scmp.eq.s32.totalorder %s17, 0
      %p51 = por %p49, %p50
      %p52 = scmp.ne.s32.totalorder %s41, %s44
      %p53 = scmp.eq.s32.totalorder %s22, 1
      %p54 = por %p52, %p53
      %p55 = scmp.ne.s32.totalorder %s44, %s45
      %p56 = scmp.eq.s32.totalorder %s22, 0
      %p57 = por %p55, %p56
      %p58 = scmp.ne.s32.totalorder %s44, %s45
      %p59 = scmp.eq.s32.totalorder %s23, 1
      %p60 = por %p58, %p59
      %p62 = scmp.ne.s32.totalorder %s45, %s61
      %p63 = scmp.eq.s32.totalorder %s23, 0
      %p64 = por %p62, %p63
      %s65 = ssub.s32 %s24, %s36
      %s66 = ssub.s32 %s25, %s32
      %s67 = sor.u32 %s65, %s66
      %p68 = scmp.eq.s32.totalorder %s67, 0
      %s70 = sadd.s32 %s69, 1
      %s71 = scalar_select %p68, %s69, %s70
      %p74 = pneg %p68
      %p75 = scmp.eq.s32.totalorder %s17, 1
      %p76 = por %p74, %p75
      %p77 = scmp.ne.s32.totalorder %s69, %s72
      %p78 = scmp.eq.s32.totalorder %s17, 0
      %p79 = por %p77, %p78
      %p80 = scmp.ne.s32.totalorder %s69, %s72
      %p81 = scmp.eq.s32.totalorder %s22, 1
      %p82 = por %p80, %p81
      %p83 = scmp.ne.s32.totalorder %s72, %s73
      %p84 = scmp.eq.s32.totalorder %s22, 0
      %p85 = por %p83, %p84
      %p86 = scmp.ne.s32.totalorder %s72, %s73
      %p87 = scmp.eq.s32.totalorder %s23, 1
      %p88 = por %p86, %p87
      %p90 = scmp.ne.s32.totalorder %s73, %s89
      %p91 = scmp.eq.s32.totalorder %s23, 0
      %p92 = por %p90, %p91
      %s93 = ssub.s32 %s24, %s36
      %s94 = ssub.s32 %s25, %s32
      %s95 = sor.u32 %s93, %s94
      %p96 = scmp.eq.s32.totalorder %s95, 0
      %s98 = sadd.s32 %s97, 1
      %s99 = scalar_select %p96, %s97, %s98
      %p102 = pneg %p96
      %p103 = scmp.eq.s32.totalorder %s17, 1
      %p104 = por %p102, %p103
      %p105 = scmp.ne.s32.totalorder %s97, %s100
      %p106 = scmp.eq.s32.totalorder %s17, 0
      %p107 = por %p105, %p106
      %p108 = scmp.ne.s32.totalorder %s97, %s100
      %p109 = scmp.eq.s32.totalorder %s22, 1
      %p110 = por %p108, %p109
      %p111 = scmp.ne.s32.totalorder %s100, %s101
      %p112 = scmp.eq.s32.totalorder %s22, 0
      %p113 = por %p111, %p112
      %p114 = scmp.ne.s32.totalorder %s100, %s101
      %p115 = scmp.eq.s32.totalorder %s23, 1
      %p116 = por %p114, %p115
      %p118 = scmp.ne.s32.totalorder %s101, %s117
      %p119 = scmp.eq.s32.totalorder %s23, 0
      %p120 = por %p118, %p119
      %p121 = scmp.le.s32.totalorder 1, %s17
      %p122 = scmp.lt.s32.totalorder %s17, 3
      %p123 = pnand %p121, %p122
      %p124 = pneg %p123
      // Predicated region
      $region9: #{tpu_custom_call.1} parent=5 // pred_check
        _
      $region10: #{tpu_custom_call.1} parent=5 // pred_check_branch
        %126 = sbr.rel (%p123) target = $region12
      $region11: #{tpu_custom_call.1} parent=5 // pred_region
        %s127 = ssub.s32 %s17, 1
      $region12: #{tpu_custom_call.1} parent=5 // pred_fallthru
        _
      %p128 = scmp.lt.s32.totalorder %s17, 2
      // Predicated region
      $region13: #{tpu_custom_call.1} parent=5 // pred_check
        %p129 = pneg %p128
      $region14: #{tpu_custom_call.1} parent=5 // pred_check_branch
        %131 = sbr.rel (%p129) target = $region16
      $region15: #{tpu_custom_call.1} parent=5 // pred_region
        // Predicated region
        $region17: #{tpu_custom_call.1} parent=15 // pred_check
          %p132 = pneg %p51
        $region18: #{tpu_custom_call.1} parent=15 // pred_check_branch
          %134 = sbr.rel (%p132) target = $region20
        $region19: #{tpu_custom_call.1} parent=15 // pred_region
          %s135 = sand.u32 %s41, 1
          %s136 = scalar_lea.sflag [#allocation3], %s135
          %s137 = sand.u32 %s41, 1
          %s138 = smul.addr %s137, 8
          %s139 = scalar_lea.vmem [#allocation2], %s138
          %s141 = ssub.s32 128, 128
          %142 = vsyncadd %s136, %s141
          %s143 = sadd.s32 %s25, %s24
          %s144 = smul.addr %s143, 128
          %s145 = scalar_lea.hbm %s0, %s144
          %s147 = sshll.u32 %s139, 4
          %s148 = int_to_ptr.vmem [resolvable:$true] %s147
          %150 = dma.hbm_to_vmem [thread:$0]  %s145, 128, %s148, %s136
        $region20: #{tpu_custom_call.1} parent=15 // pred_fallthru
          _
        // Predicated region
        $region21: #{tpu_custom_call.1} parent=15 // pred_check
          %p151 = pneg %p79
        $region22: #{tpu_custom_call.1} parent=15 // pred_check_branch
          %153 = sbr.rel (%p151) target = $region24
        $region23: #{tpu_custom_call.1} parent=15 // pred_region
          %s154 = sand.u32 %s69, 1
          %s155 = scalar_lea.sflag [#allocation6], %s154
          %s156 = sand.u32 %s69, 1
          %s157 = smul.addr %s156, 32
          %s158 = scalar_lea.vmem [#allocation5], %s157
          %s160 = ssub.s32 512, 512
          %161 = vsyncadd %s155, %s160
          %s162 = smul.addr %s24, 4
          %s163 = sadd.s32 %s25, %s162
          %s164 = smul.addr %s163, 128
          %s165 = scalar_lea.hbm %s1, %s164
          %s166 = sshll.u32 %s158, 4
          %s167 = int_to_ptr.vmem [resolvable:$true] %s166
          %172 = dma.hbm_to_vmem [thread:$0]  %s165, 512, %s167, %s155, 128, 128, 8
        $region24: #{tpu_custom_call.1} parent=15 // pred_fallthru
          _
      $region16: #{tpu_custom_call.1} parent=5 // pred_fallthru
        _
      %p173 = scmp.le.s32.totalorder 1, %s17
      %p174 = scmp.lt.s32.totalorder %s17, 3
      %p175 = pnand %p173, %p174
      %p176 = pneg %p175
      // Predicated region
      $region25: #{tpu_custom_call.1} parent=5 // pred_check
        _
      $region26: #{tpu_custom_call.1} parent=5 // pred_check_branch
        %178 = sbr.rel (%p175) target = $region28
      $region27: #{tpu_custom_call.1} parent=5 // pred_region
        %s179 = ssub.s32 %s17, 1
        %s180 = sand.u32 %s44, 1
        %s181 = scalar_lea.sflag [#allocation3], %s180
        %s182 = sand.u32 %s44, 1
        %s183 = smul.addr %s182, 8
        %s184 = scalar_lea.vmem [#allocation2], %s183
        // Predicated region
        $region29: #{tpu_custom_call.1} parent=27 // pred_check
          %p185 = pneg %p57
        $region30: #{tpu_custom_call.1} parent=27 // pred_check_branch
          %187 = sbr.rel (%p185) target = $region32
        $region31: #{tpu_custom_call.1} parent=27 // pred_region
          %188 = dma.done %s181, 128
        $region32: #{tpu_custom_call.1} parent=27 // pred_fallthru
          _
        %s189 = sand.u32 %s72, 1
        %s190 = scalar_lea.sflag [#allocation6], %s189
        %s191 = sand.u32 %s72, 1
        %s192 = smul.addr %s191, 32
        %s193 = scalar_lea.vmem [#allocation5], %s192
        // Predicated region
        $region33: #{tpu_custom_call.1} parent=27 // pred_check
          %p194 = pneg %p85
        $region34: #{tpu_custom_call.1} parent=27 // pred_check_branch
          %196 = sbr.rel (%p194) target = $region36
        $region35: #{tpu_custom_call.1} parent=27 // pred_region
          %197 = dma.done %s190, 512
        $region36: #{tpu_custom_call.1} parent=27 // pred_fallthru
          _
        %s198 = sand.u32 %s44, 1
        %s199 = scalar_lea.sflag [#allocation3], %s198
        %s200 = sand.u32 %s44, 1
        %s201 = smul.addr %s200, 8
        %s202 = scalar_lea.vmem [#allocation2], %s201
        %p203 = pneg %p57
        %p204 = pneg %p54
        %s205 = sand.u32 %s72, 1
        %s206 = scalar_lea.sflag [#allocation6], %s205
        %s207 = sand.u32 %s72, 1
        %s208 = smul.addr %s207, 32
        %s209 = scalar_lea.vmem [#allocation5], %s208
        %p210 = pneg %p85
        %p211 = pneg %p82
        %p212 = pneg %p113
        %p213 = pneg %p110
        %s214 = sand.u32 %s100, 1
        %s215 = scalar_lea.sflag [#allocation4], %s214
        %s216 = sand.u32 %s100, 1
        %s217 = smul.addr %s216, 8
        %s218 = scalar_lea.vmem [#allocation7], %s217
        %v219 = vld [vmem:[%s184] sm:$0xff]
        %v220 = vld [vmem:[%s193] sm:$0xff]
        %v221 = vsub.f32 %v220, %v219
        %v222 = vand.u32 2147483647, %v221
        %v223 = vadd.f32 %v222, 0.0
        %s224 = scalar_lea.vmem %s193, 8 [#allocation5]
        %v225 = vld [vmem:[%s224] sm:$0xff]
        %v226 = vsub.f32 %v220, %v225
        %v227 = vand.u32 2147483647, %v226
        %v228 = vadd.f32 %v227, 0.0
        %s229 = scalar_lea.vmem %s193, 16 [#allocation5]
        %v230 = vld [vmem:[%s229] sm:$0xff]
        %v231 = vsub.f32 %v220, %v230
        %v232 = vand.u32 2147483647, %v231
        %v233 = vadd.f32 %v232, 0.0
        %s234 = scalar_lea.vmem %s193, 24 [#allocation5]
        %v235 = vld [vmem:[%s234] sm:$0xff]
        %v236 = vsub.f32 %v220, %v235
        %v237 = vand.u32 2147483647, %v236
        %v238 = vadd.f32 %v237, 0.0
        %v239 = vsub.f32 %v225, %v219
        %v240 = vand.u32 2147483647, %v239
        %v241 = vadd.f32 %v223, %v240
        %v242 = vsub.f32 %v225, %v230
        %v243 = vand.u32 2147483647, %v242
        %v244 = vadd.f32 %v243, 0.0
        %v245 = vsub.f32 %v225, %v235
        %v246 = vand.u32 2147483647, %v245
        %v247 = vadd.f32 %v228, %v246
        %v248 = vsub.f32 %v230, %v219
        %v249 = vand.u32 2147483647, %v248
        %v250 = vadd.f32 %v241, %v249
        %v251 = vsub.f32 %v230, %v235
        %v252 = vand.u32 2147483647, %v251
        %v253 = vadd.f32 %v233, %v252
        %v254 = vsub.f32 %v235, %v219
        %v255 = vand.u32 2147483647, %v254
        %v256 = vadd.f32 %v250, %v255
        %v257 = vadd.f32 %v247, %v253
        %v258 = vadd.f32 %v257, %v238
        %v259 = vadd.f32 %v258, %v244
        %v260 = vrcp.pop 4.0
        %v261 = vmul.f32 %v256, %v260
        %v262 = vrcp.pop 12.0
        %v263 = vmul.f32 %v259, %v262
        %v264 = vsub.f32 %v261, %v263
        %265 = vst [vmem:[%s218] sm:$0xff] %v264
        %s266 = sand.u32 %s100, 1
        %s267 = scalar_lea.sflag [#allocation4], %s266
        %s268 = sand.u32 %s100, 1
        %s269 = smul.addr %s268, 8
        %s270 = scalar_lea.vmem [#allocation7], %s269
        // Predicated region
        $region37: #{tpu_custom_call.1} parent=27 // pred_check
          %p271 = pneg %p110
        $region38: #{tpu_custom_call.1} parent=27 // pred_check_branch
          %273 = sbr.rel (%p271) target = $region40
        $region39: #{tpu_custom_call.1} parent=27 // pred_region
          %s275 = ssub.s32 128, 128
          %276 = vsyncadd %s267, %s275
          %s277 = sadd.s32 %s27, %s26
          %s278 = smul.addr %s277, 128
          %s279 = scalar_lea.hbm %s2, %s278
          %s281 = sshll.u32 %s270, 4
          %s282 = int_to_ptr.vmem [resolvable:$true] %s281
          %284 = dma.vmem_to_hbm [thread:$0]  %s282, 128, %s279, %s267
        $region40: #{tpu_custom_call.1} parent=27 // pred_fallthru
          _
      $region28: #{tpu_custom_call.1} parent=5 // pred_fallthru
        _
      %p285 = scmp.le.s32.totalorder 2, %s17
      // Predicated region
      $region41: #{tpu_custom_call.1} parent=5 // pred_check
        %p286 = pneg %p285
      $region42: #{tpu_custom_call.1} parent=5 // pred_check_branch
        %288 = sbr.rel (%p286) target = $region44
      $region43: #{tpu_custom_call.1} parent=5 // pred_region
        %s289 = ssub.s32 %s17, 2
        // Predicated region
        $region45: #{tpu_custom_call.1} parent=43 // pred_check
          %p290 = pneg %p116
        $region46: #{tpu_custom_call.1} parent=43 // pred_check_branch
          %292 = sbr.rel (%p290) target = $region48
        $region47: #{tpu_custom_call.1} parent=43 // pred_region
          %s293 = sand.u32 %s101, 1
          %s294 = scalar_lea.sflag [#allocation4], %s293
          %s295 = sand.u32 %s101, 1
          %s296 = smul.addr %s295, 8
          %s297 = scalar_lea.vmem [#allocation7], %s296
          %298 = dma.done %s294, 128
        $region48: #{tpu_custom_call.1} parent=43 // pred_fallthru
          _
      $region44: #{tpu_custom_call.1} parent=5 // pred_fallthru
        _
    $region6: #{tpu_custom_call.1} parent=1 // loop_footer
      %s21 = sadd.s32 1, %s17
    $region7: #{tpu_custom_call.1} parent=1 // loop_footer_branch
      %16 = sbr.rel target = $region3
    $region8: #{tpu_custom_call.1} parent=1 // loop_exit
      _
    %299 = vsyncpa [#allocation3], 1
    %s300 = scalar_lea.sflag [#allocation3], 1
    %301 = vsyncpa %s300, 1
    %302 = vsyncpa [#allocation6], 1
    %s303 = scalar_lea.sflag [#allocation6], 1
    %304 = vsyncpa %s303, 1
    %305 = vsyncpa [#allocation4], 1
    %s306 = scalar_lea.sflag [#allocation4], 1
    %307 = vsyncpa %s306, 1

</llo_original>
